<compile_context>
chip_gen: v6e
topology: v6e:2x2x1
jax: 0.10.0
libtpu: 0.0.40
codegen_flags: <defaults>
</compile_context>

<pallas_src>
import jax
import jax.numpy as jnp
from jax.experimental import pallas as pl
from jax.experimental.pallas import tpu as pltpu


def make_positional_encoding(embedding_dim: int, max_tokens: int,
                             scalar: float = 10000.0) -> jnp.ndarray:
    """Deterministic sin/cos positional-encoding table, identical to the torch init.
    (Assumes even embedding_dim, same as the PyTorch reference.)"""
    positions = jnp.arange(max_tokens, dtype=jnp.float32)[:, None]          # (T, 1)
    even_dims = jnp.arange(0, embedding_dim, 2, dtype=jnp.float32)          # (D/2,)
    inv_freq = jnp.power(scalar, even_dims / embedding_dim)                 # (D/2,)
    angles = positions / inv_freq                                           # (T, D/2)
    pe = jnp.zeros((max_tokens, embedding_dim), dtype=jnp.float32)
    pe = pe.at[:, 0::2].set(jnp.sin(angles))
    pe = pe.at[:, 1::2].set(jnp.cos(angles))
    return pe


def _pos_enc_kernel(x_ref, pe_ref, o_ref):
    # x_ref/o_ref: (bb, tt, td) in x.dtype; pe_ref: (tt, td) float32.
    # f32 add (matches the torch f32 PE parameter), store back in x.dtype.
    # (tt, td) broadcasts over the leading batch dim of the x block.
    o_ref[...] = (x_ref[...].astype(jnp.float32) + pe_ref[...]).astype(o_ref.dtype)


def _round_down(v: int, m: int) -> int:
    return (v // m) * m


def _pick_tile(dim: int, unit: int, cap: int, max_search: int = 64) -> int:
    """Tile for `dim`: a multiple of `unit`, never larger than max(unit, cap)
    (full-extent only if the whole dim already fits the cap).  Prefers an exact
    divisor of `dim` (bounded search) so blocks stay full; otherwise returns the
    capped multiple of `unit` and lets Pallas mask the ragged last block.
    There is NO full-array fallback."""
    if dim <= cap:
        return dim
    capped = max(unit, _round_down(cap, unit))
    c = capped
    for _ in range(max_search):
        if dim % c == 0:
            return c
        c -= unit
        if c < unit:
            break
    return capped


def _choose_tiles(B: int, T: int, D: int, x_itemsize: int,
                  target_bytes: int = 2 * 1024 * 1024):
    """Pick (bb, tt, td) so each x/out block is ~target_bytes, td is a multiple of
    128 (or the full D), tt is a multiple of 8 (or the full T), and bb fills the
    remaining budget.  Every tile is bounded regardless of shape."""
    budget_elems = max(8 * 128, target_bytes // x_itemsize)
    # Lane (last) dim: keep at least 8 rows' worth of budget available.
    lane_cap = max(128, _round_down(budget_elems // 8, 128))
    td = D if D <= lane_cap else _pick_tile(D, 128, lane_cap)
    # Sublane (second-to-last) dim.
    rows_cap = max(8, budget_elems // td)
    tt = T if T <= rows_cap else _pick_tile(T, 8, rows_cap)
    # Leading batch dim: no layout constraint, just fill the byte budget.
    bb = max(1, min(B, budget_elems // (tt * td)))
    return bb, tt, td


def _vmem_limit_bytes(bb: int, tt: int, td: int, x_itemsize: int) -> int:
    """Conservative scoped-VMEM request: double-buffered x + out (x.dtype) and
    PE (f32), with (8, 128) tile padding, plus 2x headroom.  Clamped so it is
    legal on v5e/v6e (128 MiB physical) and v7x (64 MiB physical)."""
    tt_pad = -(-tt // 8) * 8
    td_pad = -(-td // 128) * 128
    blk_x = bb * tt_pad * td_pad * x_itemsize
    blk_pe = tt_pad * td_pad * 4
    need = 2 * (2 * blk_x) + 2 * blk_pe
    return int(min(max(2 * need, 16 * 1024 * 1024), 48 * 1024 * 1024))


def positional_encoding_forward(x: jnp.ndarray, pe_table: jnp.ndarray,
                                dropout_probability: float = 0.0) -> jnp.ndarray:
    """x: (B, T, D). Returns x + pe_table[:T, :] (broadcast over batch)."""
    assert x.ndim == 3
    B, T, D = x.shape
    assert pe_table.shape[1] == D and pe_table.shape[0] >= T
    # Dropout with p=0.0 is the identity.
    # TODO(synk): if dropout_probability > 0 were required, use pltpu.prng_seed +
    # pltpu.stateful_bernoulli inside the kernel.
    assert dropout_probability == 0.0

    pe = pe_table[:T, :].astype(jnp.float32)   # keep PE in f32 (torch parameter dtype)

    x_itemsize = jnp.dtype(x.dtype).itemsize
    bb, tt, td = _choose_tiles(B, T, D, x_itemsize)
    grid = (pl.cdiv(T, tt), pl.cdiv(D, td), pl.cdiv(B, bb))   # batch innermost -> PE reuse

    # Advisory cost for XLA's scheduler: one add/elem, read x + PE once, write out.
    cost = pl.CostEstimate(
        flops=B * T * D,
        transcendentals=0,
        bytes_accessed=2 * B * T * D * x_itemsize + T * D * 4,
    )

    out = pl.pallas_call(
        _pos_enc_kernel,
        out_shape=jax.ShapeDtypeStruct((B, T, D), x.dtype),
        grid_spec=pltpu.PrefetchScalarGridSpec(
            num_scalar_prefetch=0,
            grid=grid,
            in_specs=[
                # x tile: (bb, tt, td); only the last two dims are vreg-tiled.
                pl.BlockSpec((bb, tt, td), lambda t, d, b: (b, t, d)),
                # PE tile: full-rank (tt, td); index independent of b -> the DMA is
                # skipped on consecutive batch steps (fetched once per (t, d)).
                pl.BlockSpec((tt, td), lambda t, d, b: (t, d)),
            ],
            out_specs=pl.BlockSpec((bb, tt, td), lambda t, d, b: (b, t, d)),
        ),
        compiler_params=pltpu.CompilerParams(
            # All axes independent: shard across TensorCores on v7x, no-op otherwise.
            dimension_semantics=("parallel", "parallel", "parallel"),
            vmem_limit_bytes=_vmem_limit_bytes(bb, tt, td, x_itemsize),
        ),
        cost_estimate=cost,
    )(x, pe)

    return out


if __name__ == "__main__":
    # Small shapes consistent with the module's forward: (batch, seq, embedding_dim)
    B, T, D = 2, 8, 32
    max_tokens = 16

    key = jax.random.PRNGKey(0)
    x = jax.random.normal(key, (B, T, D), dtype=jnp.float32)

    pe_table = make_positional_encoding(embedding_dim=D, max_tokens=max_tokens)

    out = positional_encoding_forward(x, pe_table)
    out = jax.block_until_ready(out)

    # Reference check in plain JAX.
    ref = x + pe_table[:T, :][None, :, :]
    assert out.shape == (B, T, D)
    assert out.dtype == x.dtype
    assert jnp.allclose(out, ref, atol=1e-6), "mismatch vs reference"

    print("KERNEL_OK")
</pallas_src>

<mosaic_0001>
module attributes {stable_mosaic.version = 11 : i64} {
  func.func @_pos_enc_kernel(%arg0: i32, %arg1: i32, %arg2: i32, %arg3: memref<2x8x32xf32, #tpu.memory_space<vmem>>, %arg4: memref<8x32xf32, #tpu.memory_space<vmem>>, %arg5: memref<2x8x32xf32, #tpu.memory_space<vmem>>) attributes {dimension_semantics = [#tpu.dimension_semantics<parallel>, #tpu.dimension_semantics<parallel>, #tpu.dimension_semantics<parallel>], iteration_bounds = array<i64: 1, 1, 1>, scalar_prefetch = 0 : i64, scratch_operands = 0 : i64, tpu.core_type = #tpu.core_type<tc>, window_params = [{transform_indices = @transform_0, window_bounds = array<i64: 2, 8, 32>}, {transform_indices = @transform_1, window_bounds = array<i64: 8, 32>}, {transform_indices = @transform_2, window_bounds = array<i64: 2, 8, 32>}]} {
    %c0 = arith.constant 0 : index
    %c0_0 = arith.constant 0 : index
    %c0_1 = arith.constant 0 : index
    %0 = vector.load %arg3[%c0, %c0_0, %c0_1] : memref<2x8x32xf32, #tpu.memory_space<vmem>>, vector<2x8x32xf32>
    %c0_2 = arith.constant 0 : index
    %c0_3 = arith.constant 0 : index
    %1 = vector.load %arg4[%c0_2, %c0_3] : memref<8x32xf32, #tpu.memory_space<vmem>>, vector<8x32xf32>
    %2 = vector.shape_cast %1 : vector<8x32xf32> to vector<1x8x32xf32>
    %3 = vector.broadcast %2 : vector<1x8x32xf32> to vector<2x8x32xf32>
    %4 = arith.addf %0, %3 : vector<2x8x32xf32>
    %c0_4 = arith.constant 0 : index
    %c0_5 = arith.constant 0 : index
    %c0_6 = arith.constant 0 : index
    %5 = vector.load %arg5[%c0_4, %c0_5, %c0_6] : memref<2x8x32xf32, #tpu.memory_space<vmem>>, vector<2x8x32xf32>
    tpu.vector_store %arg5[%c0_4, %c0_5, %c0_6], %4 {strides = array<i32>} : memref<2x8x32xf32, #tpu.memory_space<vmem>>, vector<2x8x32xf32>,
    return
  }
  func.func @transform_0(%arg0: i32, %arg1: i32, %arg2: i32) -> (i32, i32, i32) {
    %c0_i32 = arith.constant 0 : i32
    return %arg2, %arg0, %arg1 : i32, i32, i32
  }
  func.func @transform_1(%arg0: i32, %arg1: i32, %arg2: i32) -> (i32, i32) {
    %c0_i32 = arith.constant 0 : i32
    return %arg0, %arg1 : i32, i32
  }
  func.func @transform_2(%arg0: i32, %arg1: i32, %arg2: i32) -> (i32, i32, i32) {
    %c0_i32 = arith.constant 0 : i32
    return %arg2, %arg0, %arg1 : i32, i32, i32
  }
}

</mosaic_0001>

<llo_original>
// kernel: tpu_custom_call.1
$region0: #{tpu_custom_call.1}
  #allocation0 [shape = 'u32[]', space=smem, size = 0x4, offset = 0x4, fixed_abs, tag = 'smem constant byte address 0x4 - core index']
  #allocation1 [shape = 'u32[144,128]{1,0:T(1,128)}', space=vmem, size = 0x12000, scoped, tag = 'internal scratch']
  %s0 = inlined_call_operand.hbm [shape: f32[2,8,32], index: 0, kind: input, shape index: {}]
  %s1 = inlined_call_operand.hbm [shape: f32[8,32], index: 1, kind: input, shape index: {}]
  %s2 = inlined_call_operand.hbm [shape: f32[2,8,32], index: 2, kind: output, shape index: {}]
  %s3 = sld [smem:[#allocation0]]
  $region26: #{tpu_custom_call.1} parent=0
    _
  %s5 = ssub.s32 1, %s3
  %s6 = scalar_select 0, %s5, %s3
  $region1: #{tpu_custom_call.1} parent=0
    #allocation2 [shape = 'u8[8192]{0}', space=vmem, size = 0x2000, scoped, tag = 'input window, operand 0, single buffered']
    #allocation3 [shape = 's32[1]{0}', space=sflag, size = 0x4, scoped, tag = 'scoped memory for tpu_custom_call.1']
    #allocation4 [shape = 's32[1]{0}', space=sflag, size = 0x4, scoped, tag = 'scoped memory for tpu_custom_call.1']
    #allocation5 [shape = 'u8[4096]{0}', space=vmem, size = 0x1000, scoped, tag = 'input window, operand 1, single buffered']
    #allocation6 [shape = 's32[1]{0}', space=sflag, size = 0x4, scoped, tag = 'scoped memory for tpu_custom_call.1']
    #allocation7 [shape = 'u8[8192]{0}', space=vmem, size = 0x2000, scoped, tag = 'output window, operand 0, single buffered']
    %7 = vsyncpa [#allocation3], 0
    %8 = vsyncpa [#allocation6], 0
    %9 = vsyncpa [#allocation4], 0
    // Predicated region
    $region2: #{tpu_custom_call.1} parent=1 // pred_check
      _
    $region3: #{tpu_custom_call.1} parent=1 // pred_check_branch
      %11 = sbr.rel (0) target = $region5
    $region4: #{tpu_custom_call.1} parent=1 // pred_region
      %s13 = ssub.s32 256, 256
      %14 = vsyncadd [#allocation3], %s13
      %s15 = sshll.u32 [#allocation2], 4
      %s16 = int_to_ptr.vmem [resolvable:$true] %s15
      %21 = dma.hbm_to_vmem [thread:$0]  %s0, 256, %s16, [#allocation3], 128, 128, 8
    $region5: #{tpu_custom_call.1} parent=1 // pred_fallthru
      _
    // Predicated region
    $region6: #{tpu_custom_call.1} parent=1 // pred_check
      _
    $region7: #{tpu_custom_call.1} parent=1 // pred_check_branch
      %23 = sbr.rel (0) target = $region9
    $region8: #{tpu_custom_call.1} parent=1 // pred_region
      %s25 = ssub.s32 128, 128
      %26 = vsyncadd [#allocation6], %s25
      %s28 = sshll.u32 [#allocation5], 4
      %s29 = int_to_ptr.vmem [resolvable:$true] %s28
      %31 = dma.hbm_to_vmem [thread:$0]  %s1, 128, %s29, [#allocation6]
    $region9: #{tpu_custom_call.1} parent=1 // pred_fallthru
      _
    // Predicated region
    $region10: #{tpu_custom_call.1} parent=1 // pred_check
      _
    $region11: #{tpu_custom_call.1} parent=1 // pred_check_branch
      %33 = sbr.rel (0) target = $region13
    $region12: #{tpu_custom_call.1} parent=1 // pred_region
      %34 = dma.done [#allocation3], 256
    $region13: #{tpu_custom_call.1} parent=1 // pred_fallthru
      _
    // Predicated region
    $region14: #{tpu_custom_call.1} parent=1 // pred_check
      _
    $region15: #{tpu_custom_call.1} parent=1 // pred_check_branch
      %36 = sbr.rel (0) target = $region17
    $region16: #{tpu_custom_call.1} parent=1 // pred_region
      %37 = dma.done [#allocation6], 128
    $region17: #{tpu_custom_call.1} parent=1 // pred_fallthru
      _
    %v38 = vld [vmem:[#allocation2] sm:$0xff]
    %v39 = vld [vmem:[#allocation2 + $0x8] sm:$0xff]
    %v40 = vld [vmem:[#allocation5] sm:$0xff]
    %v41 = vadd.f32 %v38, %v40
    %v42 = vadd.f32 %v39, %v40
    %vm43 = vcmask 261120
    %44 = vst.msk [vmem:[#allocation7] sm:$0xff] %vm43, %v41
    %45 = vst.msk [vmem:[#allocation7 + $0x8] sm:$0xff] %vm43, %v42
    // Predicated region
    $region18: #{tpu_custom_call.1} parent=1 // pred_check
      _
    $region19: #{tpu_custom_call.1} parent=1 // pred_check_branch
      %47 = sbr.rel (0) target = $region21
    $region20: #{tpu_custom_call.1} parent=1 // pred_region
      %s49 = ssub.s32 256, 256
      %50 = vsyncadd [#allocation4], %s49
      %s51 = sshll.u32 [#allocation7], 4
      %s52 = int_to_ptr.vmem [resolvable:$true] %s51
      %57 = dma.vmem_to_hbm [thread:$0]  %s52, 256, %s2, [#allocation4], 128, 128, 8
    $region21: #{tpu_custom_call.1} parent=1 // pred_fallthru
      _
    // Predicated region
    $region22: #{tpu_custom_call.1} parent=1 // pred_check
      _
    $region23: #{tpu_custom_call.1} parent=1 // pred_check_branch
      %59 = sbr.rel (0) target = $region25
    $region24: #{tpu_custom_call.1} parent=1 // pred_region
      %60 = dma.done [#allocation4], 256
    $region25: #{tpu_custom_call.1} parent=1 // pred_fallthru
      _
    %61 = vsyncpa [#allocation3], 1
    %62 = vsyncpa [#allocation6], 1
    %63 = vsyncpa [#allocation4], 1

</llo_original>
